<compile_context>
chip_gen: v5e
topology: v5e:2x2
jax: 0.10.0
libtpu: 0.0.40
codegen_flags: <defaults>
</compile_context>

<pallas_src>
import math

import jax
import jax.numpy as jnp
from jax.experimental import pallas as pl
from jax.experimental.pallas import tpu as pltpu

_LANES = 128
_BLOCK_ROWS = 2048                       # (2048, 128) f32/i32 block = 1 MiB per grid step
_XLA_BYPASS_ELEMS = 65536                # below this, plain XLA iota is strictly faster


def _range_kernel(off_ref, local_ref, out_ref):
    # off_ref:   SMEM (n_blocks,)  -- per-block offset: start + i*block_elems*delta
    # local_ref: VMEM (rows, 128)  -- block-invariant pattern: (r*128 + l) * delta
    # out_ref:   VMEM (rows, 128)
    # One broadcast add per output vreg; writeback DMA is the bottleneck.
    out_ref[...] = off_ref[pl.program_id(0)] + local_ref[...]


def _scalar(v):
    if isinstance(v, jax.Array):
        return v.item()
    return v


def _num_elements(start, limit, delta, is_int) -> int:
    if delta == 0:
        raise ValueError("delta must be non-zero")
    if is_int:
        # Exact integer ceiling division (works for negative delta too).
        return max(-((limit - start) // -delta), 0)
    return max(int(math.ceil((limit - start) / delta)), 0)


def onnx_range(start, limit, delta):
    """Pallas equivalent of OnnxRange.forward(start, limit, delta)."""
    s, l, d = _scalar(start), _scalar(limit), _scalar(delta)

    is_int = all(isinstance(v, int) and not isinstance(v, bool) for v in (s, l, d))
    out_dtype = jnp.int32 if is_int else jnp.float32

    n = _num_elements(s, l, d, is_int)
    if n == 0:
        return jnp.zeros((0,), dtype=out_dtype)
    if n >= 2 ** 31:
        raise ValueError("onnx_range: N >= 2**31 elements overflows int32 index math")

    start_c = jnp.asarray(s, dtype=out_dtype)
    delta_c = jnp.asarray(d, dtype=out_dtype)

    # Small-N bypass: fixed pallas_call + pipeline overhead dominates tiny
    # ranges (the common ONNX Range case); one fused XLA iota is faster and
    # yields the exact length directly.
    if n < _XLA_BYPASS_ELEMS:
        idx = jax.lax.iota(jnp.int32, n).astype(out_dtype)
        return start_c + idx * delta_c

    total_rows = pl.cdiv(n, _LANES)            # pad only to one 128-lane row
    block_rows = min(_BLOCK_ROWS, total_rows)  # single full block for mid-size N
    block_elems = block_rows * _LANES
    n_blocks = pl.cdiv(total_rows, block_rows)

    # Per-block start offsets (SMEM scalars): start + (i * block_elems) * delta.
    off = start_c + (jnp.arange(n_blocks, dtype=jnp.int32)
                     * block_elems).astype(out_dtype) * delta_c

    # Block-invariant local pattern (DMA'd once, resident in VMEM):
    # local[r, l] = (r * 128 + l) * delta.  Exact for int32; within ~1 ulp of
    # start + idx*delta for float32 (arange-class error).
    local = (jnp.arange(block_elems, dtype=jnp.int32)
             .reshape(block_rows, _LANES).astype(out_dtype) * delta_c)

    padded = pl.pallas_call(
        _range_kernel,
        out_shape=jax.ShapeDtypeStruct((total_rows, _LANES), out_dtype),
        grid=(n_blocks,),
        in_specs=[
            pl.BlockSpec(memory_space=pltpu.SMEM),           # off
            pl.BlockSpec((block_rows, _LANES), lambda i: (0, 0)),  # local (resident)
        ],
        out_specs=pl.BlockSpec((block_rows, _LANES), lambda i: (i, 0)),
        compiler_params=pltpu.CompilerParams(
            dimension_semantics=("parallel",),               # shards grid over v7x's 2 TCs
        ),
        cost_estimate=pl.CostEstimate(
            flops=2 * n, bytes_accessed=4 * (n + block_elems), transcendentals=0),
    )(off, local)

    flat = padded.reshape(-1)  # row-major flatten of (rows, 128): free
    if total_rows * _LANES == n:
        return flat
    # TODO(synk): emit an exact-length rank-1 output (clipped 1-D BlockSpec) once
    # the lane-dense Mosaic layout for rank-1 outputs is reliable; this slice
    # costs an extra read+write pass whenever n % 128 != 0 (rare after the
    # small-N bypass, but still ~3x HBM traffic when hit).
    return flat[:n]


if __name__ == "__main__":
    # --- Small cases (XLA bypass path) --------------------------------------
    out_f = onnx_range(jnp.asarray(2.0, jnp.float32),
                       jnp.asarray(10.0, jnp.float32),
                       jnp.asarray(0.5, jnp.float32))
    jax.block_until_ready(out_f)
    ref_f = jnp.arange(2.0, 10.0, 0.5, dtype=jnp.float32)
    assert out_f.shape == ref_f.shape and out_f.dtype == ref_f.dtype
    assert bool(jnp.allclose(out_f, ref_f)), (out_f, ref_f)

    out_i = onnx_range(0, 23, 3)
    jax.block_until_ready(out_i)
    ref_i = jnp.arange(0, 23, 3, dtype=jnp.int32)
    assert out_i.shape == ref_i.shape and out_i.dtype == ref_i.dtype
    assert bool(jnp.all(out_i == ref_i)), (out_i, ref_i)

    # --- Pallas path: single block, n % 128 == 0 (no tail slice) ------------
    out_m = onnx_range(0.0, 65536.0, 0.5)          # n = 131072
    jax.block_until_ready(out_m)
    ref_m = jnp.arange(0.0, 65536.0, 0.5, dtype=jnp.float32)
    assert out_m.shape == ref_m.shape
    assert bool(jnp.allclose(out_m, ref_m))

    # --- Pallas path: multi-block float, clipped last block + tail slice ----
    out_big = onnx_range(0.0, 1000000.0, 1.0)      # n = 1_000_000 (4 grid steps)
    jax.block_until_ready(out_big)
    ref_big = jnp.arange(0.0, 1000000.0, 1.0, dtype=jnp.float32)
    assert out_big.shape == ref_big.shape
    assert bool(jnp.allclose(out_big, ref_big))

    # --- Pallas path: multi-block int32, exact equality ---------------------
    out_bi = onnx_range(0, 1000000, 3)             # n = 333_334 (2 grid steps)
    jax.block_until_ready(out_bi)
    ref_bi = jnp.arange(0, 1000000, 3, dtype=jnp.int32)
    assert out_bi.shape == ref_bi.shape and out_bi.dtype == ref_bi.dtype
    assert bool(jnp.all(out_bi == ref_bi))

    # --- Random scalar inputs derived from PRNGKey(0) (deterministic) -------
    key = jax.random.PRNGKey(0)
    ks, kd = jax.random.split(key)
    start_t = jax.random.uniform(ks, (), dtype=jnp.float32, minval=-5.0, maxval=5.0)
    delta_t = jax.random.uniform(kd, (), dtype=jnp.float32, minval=0.25, maxval=1.0)
    limit_t = start_t + jnp.float32(37.3)
    out_r = onnx_range(start_t, limit_t, delta_t)
    jax.block_until_ready(out_r)
    ref_r = jnp.arange(start_t.item(), limit_t.item(), delta_t.item(),
                       dtype=jnp.float32)
    assert out_r.shape == ref_r.shape
    assert bool(jnp.allclose(out_r, ref_r)), (out_r, ref_r)

    print("KERNEL_OK")
</pallas_src>

<mosaic_0001>
module attributes {stable_mosaic.version = 11 : i64} {
  func.func @_range_kernel(%arg0: i32, %arg1: memref<1xf32, #tpu.memory_space<smem>>, %arg2: memref<1024x128xf32, #tpu.memory_space<vmem>>, %arg3: memref<1024x128xf32, #tpu.memory_space<vmem>>) attributes {dimension_semantics = [#tpu.dimension_semantics<parallel>], iteration_bounds = array<i64: 1>, scalar_prefetch = 0 : i64, scratch_operands = 0 : i64, tpu.core_type = #tpu.core_type<tc>, window_params = [{transform_indices = @transform_0, window_bounds = array<i64: 1>}, {pipeline_mode = #tpu.pipeline_mode<synchronous>, transform_indices = @transform_1, window_bounds = array<i64: 1024, 128>}, {transform_indices = @transform_2, window_bounds = array<i64: 1024, 128>}]} {
    %0 = arith.index_cast %arg0 : i32 to index
    %1 = memref.load %arg1[%0] : memref<1xf32, #tpu.memory_space<smem>>
    %c0 = arith.constant 0 : index
    %c0_0 = arith.constant 0 : index
    %2 = vector.load %arg2[%c0, %c0_0] : memref<1024x128xf32, #tpu.memory_space<vmem>>, vector<1024x128xf32>
    %3 = vector.broadcast %1 : f32 to vector<1024x128xf32>
    %4 = arith.addf %3, %2 : vector<1024x128xf32>
    %c0_1 = arith.constant 0 : index
    %c0_2 = arith.constant 0 : index
    %5 = vector.load %arg3[%c0_1, %c0_2] : memref<1024x128xf32, #tpu.memory_space<vmem>>, vector<1024x128xf32>
    tpu.vector_store %arg3[%c0_1, %c0_2], %4 {strides = array<i32>} : memref<1024x128xf32, #tpu.memory_space<vmem>>, vector<1024x128xf32>,
    return
  }
  func.func @transform_0(%arg0: i32) -> i32 {
    %c0_i32 = arith.constant 0 : i32
    %c0_i32_0 = arith.constant 0 : i32
    return %c0_i32 : i32
  }
  func.func @transform_1(%arg0: i32) -> (i32, i32) {
    %c0_i32 = arith.constant 0 : i32
    %c0_i32_0 = arith.constant 0 : i32
    %c0_i32_1 = arith.constant 0 : i32
    return %c0_i32, %c0_i32_0 : i32, i32
  }
  func.func @transform_2(%arg0: i32) -> (i32, i32) {
    %c0_i32 = arith.constant 0 : i32
    %c0_i32_0 = arith.constant 0 : i32
    return %arg0, %c0_i32 : i32, i32
  }
}

</mosaic_0001>

<llo_original>
// kernel: tpu_custom_call.1
$region0: #{tpu_custom_call.1}
  #allocation0 [shape = 'u32[]', space=smem, size = 0x4, offset = 0x4, fixed_abs, tag = 'smem constant byte address 0x4 - core index']
  #allocation1 [shape = 'u32[72,128]{1,0:T(1,128)}', space=vmem, size = 0x9000, scoped, tag = 'internal scratch']
  #allocation2 [shape = 'f32[1]{0:T(128)S(6)}', space=smem, size = 0x200, scoped, tag = 'scoped memory for tpu_custom_call.1']
  %s0 = inlined_call_operand.<no memory space> [shape: f32[1], index: 0, kind: input, shape index: {}]
  %s1 = inlined_call_operand.hbm [shape: f32[1024,128], index: 1, kind: input, shape index: {}]
  %s2 = inlined_call_operand.hbm [shape: f32[1024,128], index: 2, kind: output, shape index: {}]
  %s3 = sld [smem:[#allocation0]]
  $region22: #{tpu_custom_call.1} parent=0
    _
  %s5 = ssub.s32 1, %s3
  %s6 = scalar_select 0, %s5, %s3
  %7 = sst [smem:[#allocation2]] %s0
  $region1: #{tpu_custom_call.1} parent=0
    #allocation3 [shape = 'u8[524288]{0}', space=vmem, size = 0x80000, scoped, tag = 'input window, operand 1, single buffered']
    #allocation4 [shape = 's32[1]{0}', space=sflag, size = 0x4, scoped, tag = 'scoped memory for tpu_custom_call.1']
    #allocation5 [shape = 's32[1]{0}', space=sflag, size = 0x4, scoped, tag = 'scoped memory for tpu_custom_call.1']
    #allocation6 [shape = 'u8[524288]{0}', space=vmem, size = 0x80000, scoped, tag = 'output window, operand 0, single buffered']
    %8 = vsyncpa [#allocation4], 0
    %9 = vsyncpa [#allocation5], 0
    // Predicated region
    $region2: #{tpu_custom_call.1} parent=1 // pred_check
      _
    $region3: #{tpu_custom_call.1} parent=1 // pred_check_branch
      %11 = sbr.rel (0) target = $region5
    $region4: #{tpu_custom_call.1} parent=1 // pred_region
      _
    $region5: #{tpu_custom_call.1} parent=1 // pred_fallthru
      _
    // Predicated region
    $region6: #{tpu_custom_call.1} parent=1 // pred_check
      _
    $region7: #{tpu_custom_call.1} parent=1 // pred_check_branch
      %13 = sbr.rel (0) target = $region9
    $region8: #{tpu_custom_call.1} parent=1 // pred_region
      %15 = vsyncadd [#allocation4], 0
      %s16 = sshll.u32 %s1, 4
      %s17 = int_to_ptr.hbm [resolvable:$true] %s16
      %s18 = sshll.u32 [#allocation3], 4
      %s19 = int_to_ptr.vmem [resolvable:$true] %s18
      %24 = dma.hbm_to_vmem [thread:$0]  %s17, 16384, %s19, [#allocation4], 128, 128, 8
    $region9: #{tpu_custom_call.1} parent=1 // pred_fallthru
      _
    // Predicated region
    $region10: #{tpu_custom_call.1} parent=1 // pred_check
      _
    $region11: #{tpu_custom_call.1} parent=1 // pred_check_branch
      %26 = sbr.rel (0) target = $region13
    $region12: #{tpu_custom_call.1} parent=1 // pred_region
      %28 = dma.done [#allocation4], 16384
    $region13: #{tpu_custom_call.1} parent=1 // pred_fallthru
      _
    %s29 = sld [smem:[#allocation2]]
    %v30 = vld [vmem:[#allocation3] sm:$0xff]
    %v31 = vld [vmem:[#allocation3 + $0x8] sm:$0xff]
    %v32 = vld [vmem:[#allocation3 + $0x10] sm:$0xff]
    %v33 = vld [vmem:[#allocation3 + $0x18] sm:$0xff]
    %v34 = vld [vmem:[#allocation3 + $0x20] sm:$0xff]
    %v35 = vld [vmem:[#allocation3 + $0x28] sm:$0xff]
    %v36 = vld [vmem:[#allocation3 + $0x30] sm:$0xff]
    %v37 = vld [vmem:[#allocation3 + $0x38] sm:$0xff]
    %v38 = vld [vmem:[#allocation3 + $0x40] sm:$0xff]
    %v39 = vld [vmem:[#allocation3 + $0x48] sm:$0xff]
    %v40 = vld [vmem:[#allocation3 + $0x50] sm:$0xff]
    %v41 = vld [vmem:[#allocation3 + $0x58] sm:$0xff]
    %v42 = vld [vmem:[#allocation3 + $0x60] sm:$0xff]
    %v43 = vld [vmem:[#allocation3 + $0x68] sm:$0xff]
    %v44 = vld [vmem:[#allocation3 + $0x70] sm:$0xff]
    %v45 = vld [vmem:[#allocation3 + $0x78] sm:$0xff]
    %v46 = vld [vmem:[#allocation3 + $0x80] sm:$0xff]
    %v47 = vld [vmem:[#allocation3 + $0x88] sm:$0xff]
    %v48 = vld [vmem:[#allocation3 + $0x90] sm:$0xff]
    %v49 = vld [vmem:[#allocation3 + $0x98] sm:$0xff]
    %v50 = vld [vmem:[#allocation3 + $0xa0] sm:$0xff]
    %v51 = vld [vmem:[#allocation3 + $0xa8] sm:$0xff]
    %v52 = vld [vmem:[#allocation3 + $0xb0] sm:$0xff]
    %v53 = vld [vmem:[#allocation3 + $0xb8] sm:$0xff]
    %v54 = vld [vmem:[#allocation3 + $0xc0] sm:$0xff]
    %v55 = vld [vmem:[#allocation3 + $0xc8] sm:$0xff]
    %v56 = vld [vmem:[#allocation3 + $0xd0] sm:$0xff]
    %v57 = vld [vmem:[#allocation3 + $0xd8] sm:$0xff]
    %v58 = vld [vmem:[#allocation3 + $0xe0] sm:$0xff]
    %v59 = vld [vmem:[#allocation3 + $0xe8] sm:$0xff]
    %v60 = vld [vmem:[#allocation3 + $0xf0] sm:$0xff]
    %v61 = vld [vmem:[#allocation3 + $0xf8] sm:$0xff]
    %v62 = vld [vmem:[#allocation3 + $0x100] sm:$0xff]
    %v63 = vld [vmem:[#allocation3 + $0x108] sm:$0xff]
    %v64 = vld [vmem:[#allocation3 + $0x110] sm:$0xff]
    %v65 = vld [vmem:[#allocation3 + $0x118] sm:$0xff]
    %v66 = vld [vmem:[#allocation3 + $0x120] sm:$0xff]
    %v67 = vld [vmem:[#allocation3 + $0x128] sm:$0xff]
    %v68 = vld [vmem:[#allocation3 + $0x130] sm:$0xff]
    %v69 = vld [vmem:[#allocation3 + $0x138] sm:$0xff]
    %v70 = vld [vmem:[#allocation3 + $0x140] sm:$0xff]
    %v71 = vld [vmem:[#allocation3 + $0x148] sm:$0xff]
    %v72 = vld [vmem:[#allocation3 + $0x150] sm:$0xff]
    %v73 = vld [vmem:[#allocation3 + $0x158] sm:$0xff]
    %v74 = vld [vmem:[#allocation3 + $0x160] sm:$0xff]
    %v75 = vld [vmem:[#allocation3 + $0x168] sm:$0xff]
    %v76 = vld [vmem:[#allocation3 + $0x170] sm:$0xff]
    %v77 = vld [vmem:[#allocation3 + $0x178] sm:$0xff]
    %v78 = vld [vmem:[#allocation3 + $0x180] sm:$0xff]
    %v79 = vld [vmem:[#allocation3 + $0x188] sm:$0xff]
    %v80 = vld [vmem:[#allocation3 + $0x190] sm:$0xff]
    %v81 = vld [vmem:[#allocation3 + $0x198] sm:$0xff]
    %v82 = vld [vmem:[#allocation3 + $0x1a0] sm:$0xff]
    %v83 = vld [vmem:[#allocation3 + $0x1a8] sm:$0xff]
    %v84 = vld [vmem:[#allocation3 + $0x1b0] sm:$0xff]
    %v85 = vld [vmem:[#allocation3 + $0x1b8] sm:$0xff]
    %v86 = vld [vmem:[#allocation3 + $0x1c0] sm:$0xff]
    %v87 = vld [vmem:[#allocation3 + $0x1c8] sm:$0xff]
    %v88 = vld [vmem:[#allocation3 + $0x1d0] sm:$0xff]
    %v89 = vld [vmem:[#allocation3 + $0x1d8] sm:$0xff]
    %v90 = vld [vmem:[#allocation3 + $0x1e0] sm:$0xff]
    %v91 = vld [vmem:[#allocation3 + $0x1e8] sm:$0xff]
    %v92 = vld [vmem:[#allocation3 + $0x1f0] sm:$0xff]
    %v93 = vld [vmem:[#allocation3 + $0x1f8] sm:$0xff]
    %v94 = vld [vmem:[#allocation3 + $0x200] sm:$0xff]
    %v95 = vld [vmem:[#allocation3 + $0x208] sm:$0xff]
    %v96 = vld [vmem:[#allocation3 + $0x210] sm:$0xff]
    %v97 = vld [vmem:[#allocation3 + $0x218] sm:$0xff]
    %v98 = vld [vmem:[#allocation3 + $0x220] sm:$0xff]
    %v99 = vld [vmem:[#allocation3 + $0x228] sm:$0xff]
    %v100 = vld [vmem:[#allocation3 + $0x230] sm:$0xff]
    %v101 = vld [vmem:[#allocation3 + $0x238] sm:$0xff]
    %v102 = vld [vmem:[#allocation3 + $0x240] sm:$0xff]
    %v103 = vld [vmem:[#allocation3 + $0x248] sm:$0xff]
    %v104 = vld [vmem:[#allocation3 + $0x250] sm:$0xff]
    %v105 = vld [vmem:[#allocation3 + $0x258] sm:$0xff]
    %v106 = vld [vmem:[#allocation3 + $0x260] sm:$0xff]
    %v107 = vld [vmem:[#allocation3 + $0x268] sm:$0xff]
    %v108 = vld [vmem:[#allocation3 + $0x270] sm:$0xff]
    %v109 = vld [vmem:[#allocation3 + $0x278] sm:$0xff]
    %v110 = vld [vmem:[#allocation3 + $0x280] sm:$0xff]
    %v111 = vld [vmem:[#allocation3 + $0x288] sm:$0xff]
    %v112 = vld [vmem:[#allocation3 + $0x290] sm:$0xff]
    %v113 = vld [vmem:[#allocation3 + $0x298] sm:$0xff]
    %v114 = vld [vmem:[#allocation3 + $0x2a0] sm:$0xff]
    %v115 = vld [vmem:[#allocation3 + $0x2a8] sm:$0xff]
    %v116 = vld [vmem:[#allocation3 + $0x2b0] sm:$0xff]
    %v117 = vld [vmem:[#allocation3 + $0x2b8] sm:$0xff]
    %v118 = vld [vmem:[#allocation3 + $0x2c0] sm:$0xff]
    %v119 = vld [vmem:[#allocation3 + $0x2c8] sm:$0xff]
    %v120 = vld [vmem:[#allocation3 + $0x2d0] sm:$0xff]
    %v121 = vld [vmem:[#allocation3 + $0x2d8] sm:$0xff]
    %v122 = vld [vmem:[#allocation3 + $0x2e0] sm:$0xff]
    %v123 = vld [vmem:[#allocation3 + $0x2e8] sm:$0xff]
    %v124 = vld [vmem:[#allocation3 + $0x2f0] sm:$0xff]
    %v125 = vld [vmem:[#allocation3 + $0x2f8] sm:$0xff]
    %v126 = vld [vmem:[#allocation3 + $0x300] sm:$0xff]
    %v127 = vld [vmem:[#allocation3 + $0x308] sm:$0xff]
    %v128 = vld [vmem:[#allocation3 + $0x310] sm:$0xff]
    %v129 = vld [vmem:[#allocation3 + $0x318] sm:$0xff]
    %v130 = vld [vmem:[#allocation3 + $0x320] sm:$0xff]
    %v131 = vld [vmem:[#allocation3 + $0x328] sm:$0xff]
    %v132 = vld [vmem:[#allocation3 + $0x330] sm:$0xff]
    %v133 = vld [vmem:[#allocation3 + $0x338] sm:$0xff]
    %v134 = vld [vmem:[#allocation3 + $0x340] sm:$0xff]
    %v135 = vld [vmem:[#allocation3 + $0x348] sm:$0xff]
    %v136 = vld [vmem:[#allocation3 + $0x350] sm:$0xff]
    %v137 = vld [vmem:[#allocation3 + $0x358] sm:$0xff]
    %v138 = vld [vmem:[#allocation3 + $0x360] sm:$0xff]
    %v139 = vld [vmem:[#allocation3 + $0x368] sm:$0xff]
    %v140 = vld [vmem:[#allocation3 + $0x370] sm:$0xff]
    %v141 = vld [vmem:[#allocation3 + $0x378] sm:$0xff]
    %v142 = vld [vmem:[#allocation3 + $0x380] sm:$0xff]
    %v143 = vld [vmem:[#allocation3 + $0x388] sm:$0xff]
    %v144 = vld [vmem:[#allocation3 + $0x390] sm:$0xff]
    %v145 = vld [vmem:[#allocation3 + $0x398] sm:$0xff]
    %v146 = vld [vmem:[#allocation3 + $0x3a0] sm:$0xff]
    %v147 = vld [vmem:[#allocation3 + $0x3a8] sm:$0xff]
    %v148 = vld [vmem:[#allocation3 + $0x3b0] sm:$0xff]
    %v149 = vld [vmem:[#allocation3 + $0x3b8] sm:$0xff]
    %v150 = vld [vmem:[#allocation3 + $0x3c0] sm:$0xff]
    %v151 = vld [vmem:[#allocation3 + $0x3c8] sm:$0xff]
    %v152 = vld [vmem:[#allocation3 + $0x3d0] sm:$0xff]
    %v153 = vld [vmem:[#allocation3 + $0x3d8] sm:$0xff]
    %v154 = vld [vmem:[#allocation3 + $0x3e0] sm:$0xff]
    %v155 = vld [vmem:[#allocation3 + $0x3e8] sm:$0xff]
    %v156 = vld [vmem:[#allocation3 + $0x3f0] sm:$0xff]
    %v157 = vld [vmem:[#allocation3 + $0x3f8] sm:$0xff]
    %v158 = vstv %s29
    %v159 = vadd.f32 %v158, %v30
    %v160 = vadd.f32 %v158, %v31
    %v161 = vadd.f32 %v158, %v32
    %v162 = vadd.f32 %v158, %v33
    %v163 = vadd.f32 %v158, %v34
    %v164 = vadd.f32 %v158, %v35
    %v165 = vadd.f32 %v158, %v36
    %v166 = vadd.f32 %v158, %v37
    %v167 = vadd.f32 %v158, %v38
    %v168 = vadd.f32 %v158, %v39
    %v169 = vadd.f32 %v158, %v40
    %v170 = vadd.f32 %v158, %v41
    %v171 = vadd.f32 %v158, %v42
    %v172 = vadd.f32 %v158, %v43
    %v173 = vadd.f32 %v158, %v44
    %v174 = vadd.f32 %v158, %v45
    %v175 = vadd.f32 %v158, %v46
    %v176 = vadd.f32 %v158, %v47
    %v177 = vadd.f32 %v158, %v48
    %v178 = vadd.f32 %v158, %v49
    %v179 = vadd.f32 %v158, %v50
    %v180 = vadd.f32 %v158, %v51
    %v181 = vadd.f32 %v158, %v52
    %v182 = vadd.f32 %v158, %v53
    %v183 = vadd.f32 %v158, %v54
    %v184 = vadd.f32 %v158, %v55
    %v185 = vadd.f32 %v158, %v56
    %v186 = vadd.f32 %v158, %v57
    %v187 = vadd.f32 %v158, %v58
    %v188 = vadd.f32 %v158, %v59
    %v189 = vadd.f32 %v158, %v60
    %v190 = vadd.f32 %v158, %v61
    %v191 = vadd.f32 %v158, %v62
    %v192 = vadd.f32 %v158, %v63
    %v193 = vadd.f32 %v158, %v64
    %v194 = vadd.f32 %v158, %v65
    %v195 = vadd.f32 %v158, %v66
    %v196 = vadd.f32 %v158, %v67
    %v197 = vadd.f32 %v158, %v68
    %v198 = vadd.f32 %v158, %v69
    %v199 = vadd.f32 %v158, %v70
    %v200 = vadd.f32 %v158, %v71
    %v201 = vadd.f32 %v158, %v72
    %v202 = vadd.f32 %v158, %v73
    %v203 = vadd.f32 %v158, %v74
    %v204 = vadd.f32 %v158, %v75
    %v205 = vadd.f32 %v158, %v76
    %v206 = vadd.f32 %v158, %v77
    %v207 = vadd.f32 %v158, %v78
    %v208 = vadd.f32 %v158, %v79
    %v209 = vadd.f32 %v158, %v80
    %v210 = vadd.f32 %v158, %v81
    %v211 = vadd.f32 %v158, %v82
    %v212 = vadd.f32 %v158, %v83
    %v213 = vadd.f32 %v158, %v84
    %v214 = vadd.f32 %v158, %v85
    %v215 = vadd.f32 %v158, %v86
    %v216 = vadd.f32 %v158, %v87
    %v217 = vadd.f32 %v158, %v88
    %v218 = vadd.f32 %v158, %v89
    %v219 = vadd.f32 %v158, %v90
    %v220 = vadd.f32 %v158, %v91
    %v221 = vadd.f32 %v158, %v92
    %v222 = vadd.f32 %v158, %v93
    %v223 = vadd.f32 %v158, %v94
    %v224 = vadd.f32 %v158, %v95
    %v225 = vadd.f32 %v158, %v96
    %v226 = vadd.f32 %v158, %v97
    %v227 = vadd.f32 %v158, %v98
    %v228 = vadd.f32 %v158, %v99
    %v229 = vadd.f32 %v158, %v100
    %v230 = vadd.f32 %v158, %v101
    %v231 = vadd.f32 %v158, %v102
    %v232 = vadd.f32 %v158, %v103
    %v233 = vadd.f32 %v158, %v104
    %v234 = vadd.f32 %v158, %v105
    %v235 = vadd.f32 %v158, %v106
    %v236 = vadd.f32 %v158, %v107
    %v237 = vadd.f32 %v158, %v108
    %v238 = vadd.f32 %v158, %v109
    %v239 = vadd.f32 %v158, %v110
    %v240 = vadd.f32 %v158, %v111
    %v241 = vadd.f32 %v158, %v112
    %v242 = vadd.f32 %v158, %v113
    %v243 = vadd.f32 %v158, %v114
    %v244 = vadd.f32 %v158, %v115
    %v245 = vadd.f32 %v158, %v116
    %v246 = vadd.f32 %v158, %v117
    %v247 = vadd.f32 %v158, %v118
    %v248 = vadd.f32 %v158, %v119
    %v249 = vadd.f32 %v158, %v120
    %v250 = vadd.f32 %v158, %v121
    %v251 = vadd.f32 %v158, %v122
    %v252 = vadd.f32 %v158, %v123
    %v253 = vadd.f32 %v158, %v124
    %v254 = vadd.f32 %v158, %v125
    %v255 = vadd.f32 %v158, %v126
    %v256 = vadd.f32 %v158, %v127
    %v257 = vadd.f32 %v158, %v128
    %v258 = vadd.f32 %v158, %v129
    %v259 = vadd.f32 %v158, %v130
    %v260 = vadd.f32 %v158, %v131
    %v261 = vadd.f32 %v158, %v132
    %v262 = vadd.f32 %v158, %v133
    %v263 = vadd.f32 %v158, %v134
    %v264 = vadd.f32 %v158, %v135
    %v265 = vadd.f32 %v158, %v136
    %v266 = vadd.f32 %v158, %v137
    %v267 = vadd.f32 %v158, %v138
    %v268 = vadd.f32 %v158, %v139
    %v269 = vadd.f32 %v158, %v140
    %v270 = vadd.f32 %v158, %v141
    %v271 = vadd.f32 %v158, %v142
    %v272 = vadd.f32 %v158, %v143
    %v273 = vadd.f32 %v158, %v144
    %v274 = vadd.f32 %v158, %v145
    %v275 = vadd.f32 %v158, %v146
    %v276 = vadd.f32 %v158, %v147
    %v277 = vadd.f32 %v158, %v148
    %v278 = vadd.f32 %v158, %v149
    %v279 = vadd.f32 %v158, %v150
    %v280 = vadd.f32 %v158, %v151
    %v281 = vadd.f32 %v158, %v152
    %v282 = vadd.f32 %v158, %v153
    %v283 = vadd.f32 %v158, %v154
    %v284 = vadd.f32 %v158, %v155
    %v285 = vadd.f32 %v158, %v156
    %v286 = vadd.f32 %v158, %v157
    %287 = vst [vmem:[#allocation6] sm:$0xff] %v159
    %288 = vst [vmem:[#allocation6 + $0x8] sm:$0xff] %v160
    %289 = vst [vmem:[#allocation6 + $0x10] sm:$0xff] %v161
    %290 = vst [vmem:[#allocation6 + $0x18] sm:$0xff] %v162
    %291 = vst [vmem:[#allocation6 + $0x20] sm:$0xff] %v163
    %292 = vst [vmem:[#allocation6 + $0x28] sm:$0xff] %v164
    %293 = vst [vmem:[#allocation6 + $0x30] sm:$0xff] %v165
    %294 = vst [vmem:[#allocation6 + $0x38] sm:$0xff] %v166
    %295 = vst [vmem:[#allocation6 + $0x40] sm:$0xff] %v167
    %296 = vst [vmem:[#allocation6 + $0x48] sm:$0xff] %v168
    %297 = vst [vmem:[#allocation6 + $0x50] sm:$0xff] %v169
    %298 = vst [vmem:[#allocation6 + $0x58] sm:$0xff] %v170
    %299 = vst [vmem:[#allocation6 + $0x60] sm:$0xff] %v171
    %300 = vst [vmem:[#allocation6 + $0x68] sm:$0xff] %v172
    %301 = vst [vmem:[#allocation6 + $0x70] sm:$0xff] %v173
    %302 = vst [vmem:[#allocation6 + $0x78] sm:$0xff] %v174
    %303 = vst [vmem:[#allocation6 + $0x80] sm:$0xff] %v175
    %304 = vst [vmem:[#allocation6 + $0x88] sm:$0xff] %v176
    %305 = vst [vmem:[#allocation6 + $0x90] sm:$0xff] %v177
    %306 = vst [vmem:[#allocation6 + $0x98] sm:$0xff] %v178
    %307 = vst [vmem:[#allocation6 + $0xa0] sm:$0xff] %v179
    %308 = vst [vmem:[#allocation6 + $0xa8] sm:$0xff] %v180
    %309 = vst [vmem:[#allocation6 + $0xb0] sm:$0xff] %v181
    %310 = vst [vmem:[#allocation6 + $0xb8] sm:$0xff] %v182
    %311 = vst [vmem:[#allocation6 + $0xc0] sm:$0xff] %v183
    %312 = vst [vmem:[#allocation6 + $0xc8] sm:$0xff] %v184
    %313 = vst [vmem:[#allocation6 + $0xd0] sm:$0xff] %v185
    %314 = vst [vmem:[#allocation6 + $0xd8] sm:$0xff] %v186
    %315 = vst [vmem:[#allocation6 + $0xe0] sm:$0xff] %v187
    %316 = vst [vmem:[#allocation6 + $0xe8] sm:$0xff] %v188
    %317 = vst [vmem:[#allocation6 + $0xf0] sm:$0xff] %v189
    %318 = vst [vmem:[#allocation6 + $0xf8] sm:$0xff] %v190
    %319 = vst [vmem:[#allocation6 + $0x100] sm:$0xff] %v191
    %320 = vst [vmem:[#allocation6 + $0x108] sm:$0xff] %v192
    %321 = vst [vmem:[#allocation6 + $0x110] sm:$0xff] %v193
    %322 = vst [vmem:[#allocation6 + $0x118] sm:$0xff] %v194
    %323 = vst [vmem:[#allocation6 + $0x120] sm:$0xff] %v195
    %324 = vst [vmem:[#allocation6 + $0x128] sm:$0xff] %v196
    %325 = vst [vmem:[#allocation6 + $0x130] sm:$0xff] %v197
    %326 = vst [vmem:[#allocation6 + $0x138] sm:$0xff] %v198
    %327 = vst [vmem:[#allocation6 + $0x140] sm:$0xff] %v199
    %328 = vst [vmem:[#allocation6 + $0x148] sm:$0xff] %v200
    %329 = vst [vmem:[#allocation6 + $0x150] sm:$0xff] %v201
    %330 = vst [vmem:[#allocation6 + $0x158] sm:$0xff] %v202
    %331 = vst [vmem:[#allocation6 + $0x160] sm:$0xff] %v203
    %332 = vst [vmem:[#allocation6 + $0x168] sm:$0xff] %v204
    %333 = vst [vmem:[#allocation6 + $0x170] sm:$0xff] %v205
    %334 = vst [vmem:[#allocation6 + $0x178] sm:$0xff] %v206
    %335 = vst [vmem:[#allocation6 + $0x180] sm:$0xff] %v207
    %336 = vst [vmem:[#allocation6 + $0x188] sm:$0xff] %v208
    %337 = vst [vmem:[#allocation6 + $0x190] sm:$0xff] %v209
    %338 = vst [vmem:[#allocation6 + $0x198] sm:$0xff] %v210
    %339 = vst [vmem:[#allocation6 + $0x1a0] sm:$0xff] %v211
    %340 = vst [vmem:[#allocation6 + $0x1a8] sm:$0xff] %v212
    %341 = vst [vmem:[#allocation6 + $0x1b0] sm:$0xff] %v213
    %342 = vst [vmem:[#allocation6 + $0x1b8] sm:$0xff] %v214
    %343 = vst [vmem:[#allocation6 + $0x1c0] sm:$0xff] %v215
    %344 = vst [vmem:[#allocation6 + $0x1c8] sm:$0xff] %v216
    %345 = vst [vmem:[#allocation6 + $0x1d0] sm:$0xff] %v217
    %346 = vst [vmem:[#allocation6 + $0x1d8] sm:$0xff] %v218
    %347 = vst [vmem:[#allocation6 + $0x1e0] sm:$0xff] %v219
    %348 = vst [vmem:[#allocation6 + $0x1e8] sm:$0xff] %v220
    %349 = vst [vmem:[#allocation6 + $0x1f0] sm:$0xff] %v221
    %350 = vst [vmem:[#allocation6 + $0x1f8] sm:$0xff] %v222
    %351 = vst [vmem:[#allocation6 + $0x200] sm:$0xff] %v223
    %352 = vst [vmem:[#allocation6 + $0x208] sm:$0xff] %v224
    %353 = vst [vmem:[#allocation6 + $0x210] sm:$0xff] %v225
    %354 = vst [vmem:[#allocation6 + $0x218] sm:$0xff] %v226
    %355 = vst [vmem:[#allocation6 + $0x220] sm:$0xff] %v227
    %356 = vst [vmem:[#allocation6 + $0x228] sm:$0xff] %v228
    %357 = vst [vmem:[#allocation6 + $0x230] sm:$0xff] %v229
    %358 = vst [vmem:[#allocation6 + $0x238] sm:$0xff] %v230
    %359 = vst [vmem:[#allocation6 + $0x240] sm:$0xff] %v231
    %360 = vst [vmem:[#allocation6 + $0x248] sm:$0xff] %v232
    %361 = vst [vmem:[#allocation6 + $0x250] sm:$0xff] %v233
    %362 = vst [vmem:[#allocation6 + $0x258] sm:$0xff] %v234
    %363 = vst [vmem:[#allocation6 + $0x260] sm:$0xff] %v235
    %364 = vst [vmem:[#allocation6 + $0x268] sm:$0xff] %v236
    %365 = vst [vmem:[#allocation6 + $0x270] sm:$0xff] %v237
    %366 = vst [vmem:[#allocation6 + $0x278] sm:$0xff] %v238
    %367 = vst [vmem:[#allocation6 + $0x280] sm:$0xff] %v239
    %368 = vst [vmem:[#allocation6 + $0x288] sm:$0xff] %v240
    %369 = vst [vmem:[#allocation6 + $0x290] sm:$0xff] %v241
    %370 = vst [vmem:[#allocation6 + $0x298] sm:$0xff] %v242
    %371 = vst [vmem:[#allocation6 + $0x2a0] sm:$0xff] %v243
    %372 = vst [vmem:[#allocation6 + $0x2a8] sm:$0xff] %v244
    %373 = vst [vmem:[#allocation6 + $0x2b0] sm:$0xff] %v245
    %374 = vst [vmem:[#allocation6 + $0x2b8] sm:$0xff] %v246
    %375 = vst [vmem:[#allocation6 + $0x2c0] sm:$0xff] %v247
    %376 = vst [vmem:[#allocation6 + $0x2c8] sm:$0xff] %v248
    %377 = vst [vmem:[#allocation6 + $0x2d0] sm:$0xff] %v249
    %378 = vst [vmem:[#allocation6 + $0x2d8] sm:$0xff] %v250
    %379 = vst [vmem:[#allocation6 + $0x2e0] sm:$0xff] %v251
    %380 = vst [vmem:[#allocation6 + $0x2e8] sm:$0xff] %v252
    %381 = vst [vmem:[#allocation6 + $0x2f0] sm:$0xff] %v253
    %382 = vst [vmem:[#allocation6 + $0x2f8] sm:$0xff] %v254
    %383 = vst [vmem:[#allocation6 + $0x300] sm:$0xff] %v255
    %384 = vst [vmem:[#allocation6 + $0x308] sm:$0xff] %v256
    %385 = vst [vmem:[#allocation6 + $0x310] sm:$0xff] %v257
    %386 = vst [vmem:[#allocation6 + $0x318] sm:$0xff] %v258
    %387 = vst [vmem:[#allocation6 + $0x320] sm:$0xff] %v259
    %388 = vst [vmem:[#allocation6 + $0x328] sm:$0xff] %v260
    %389 = vst [vmem:[#allocation6 + $0x330] sm:$0xff] %v261
    %390 = vst [vmem:[#allocation6 + $0x338] sm:$0xff] %v262
    %391 = vst [vmem:[#allocation6 + $0x340] sm:$0xff] %v263
    %392 = vst [vmem:[#allocation6 + $0x348] sm:$0xff] %v264
    %393 = vst [vmem:[#allocation6 + $0x350] sm:$0xff] %v265
    %394 = vst [vmem:[#allocation6 + $0x358] sm:$0xff] %v266
    %395 = vst [vmem:[#allocation6 + $0x360] sm:$0xff] %v267
    %396 = vst [vmem:[#allocation6 + $0x368] sm:$0xff] %v268
    %397 = vst [vmem:[#allocation6 + $0x370] sm:$0xff] %v269
    %398 = vst [vmem:[#allocation6 + $0x378] sm:$0xff] %v270
    %399 = vst [vmem:[#allocation6 + $0x380] sm:$0xff] %v271
    %400 = vst [vmem:[#allocation6 + $0x388] sm:$0xff] %v272
    %401 = vst [vmem:[#allocation6 + $0x390] sm:$0xff] %v273
    %402 = vst [vmem:[#allocation6 + $0x398] sm:$0xff] %v274
    %403 = vst [vmem:[#allocation6 + $0x3a0] sm:$0xff] %v275
    %404 = vst [vmem:[#allocation6 + $0x3a8] sm:$0xff] %v276
    %405 = vst [vmem:[#allocation6 + $0x3b0] sm:$0xff] %v277
    %406 = vst [vmem:[#allocation6 + $0x3b8] sm:$0xff] %v278
    %407 = vst [vmem:[#allocation6 + $0x3c0] sm:$0xff] %v279
    %408 = vst [vmem:[#allocation6 + $0x3c8] sm:$0xff] %v280
    %409 = vst [vmem:[#allocation6 + $0x3d0] sm:$0xff] %v281
    %410 = vst [vmem:[#allocation6 + $0x3d8] sm:$0xff] %v282
    %411 = vst [vmem:[#allocation6 + $0x3e0] sm:$0xff] %v283
    %412 = vst [vmem:[#allocation6 + $0x3e8] sm:$0xff] %v284
    %413 = vst [vmem:[#allocation6 + $0x3f0] sm:$0xff] %v285
    %414 = vst [vmem:[#allocation6 + $0x3f8] sm:$0xff] %v286
    // Predicated region
    $region14: #{tpu_custom_call.1} parent=1 // pred_check
      _
    $region15: #{tpu_custom_call.1} parent=1 // pred_check_branch
      %416 = sbr.rel (0) target = $region17
    $region16: #{tpu_custom_call.1} parent=1 // pred_region
      %418 = vsyncadd [#allocation5], 0
      %s419 = sshll.u32 [#allocation6], 4
      %s420 = int_to_ptr.vmem [resolvable:$true] %s419
      %s421 = sshll.u32 %s2, 4
      %s422 = int_to_ptr.hbm [resolvable:$true] %s421
      %427 = dma.vmem_to_hbm [thread:$0]  %s420, 16384, %s422, [#allocation5], 128, 128, 8
    $region17: #{tpu_custom_call.1} parent=1 // pred_fallthru
      _
    // Predicated region
    $region18: #{tpu_custom_call.1} parent=1 // pred_check
      _
    $region19: #{tpu_custom_call.1} parent=1 // pred_check_branch
      %429 = sbr.rel (0) target = $region21
    $region20: #{tpu_custom_call.1} parent=1 // pred_region
      %431 = dma.done [#allocation5], 16384
    $region21: #{tpu_custom_call.1} parent=1 // pred_fallthru
      _
    %432 = vsyncpa [#allocation4], 1
    %433 = vsyncpa [#allocation5], 1

</llo_original>
